<compile_context>
chip_gen: v7x
topology: tpu7x:2x2x1
jax: 0.10.0
libtpu: 0.0.40
codegen_flags: <defaults>
</compile_context>

<pallas_src>
import functools

import jax
import jax.numpy as jnp
from jax import lax
from jax.experimental import pallas as pl
from jax.experimental.pallas import tpu as pltpu

# Columns processed per inner-loop step: lane-dense (multiple of 128) and small
# enough that the (hidden, _CHUNK) f32 activation stays in vregs.
_CHUNK = 512


def _round_up(n, m):
    return m * pl.cdiv(n, m)


def _mlp_kernel(x_ref, w1_ref, b1_ref, w2_ref, b2_ref, o_ref):
    # x_ref : (chunks_per_tile, in, CHUNK)      o_ref : (chunks_per_tile, out, CHUNK)
    # w1_ref: (hidden, in)   b1_ref: (hidden, 1)
    # w2_ref: (out, hidden)  b2_ref: (out, 1)
    chunks_per_tile, _, chunk = x_ref.shape
    hidden = w1_ref.shape[0]
    out_features = w2_ref.shape[0]

    # Weights / biases are VMEM-resident (constant index_map).  Load and
    # broadcast ONCE per grid step, outside the chunk loop (broadcast_in_dim is
    # not CSE'd, so hoist it).
    w1 = w1_ref[...]
    w2 = w2_ref[...]
    b1 = jnp.broadcast_to(b1_ref[...], (hidden, chunk))
    b2 = jnp.broadcast_to(b2_ref[...], (out_features, chunk))

    def body(c, carry):
        xc = x_ref[c]                                                  # (in, CHUNK)
        h = jnp.dot(w1, xc, preferred_element_type=jnp.float32) + b1   # (hidden, CHUNK)
        h = jnp.maximum(h, 0.0)                                        # ReLU, lane-dense
        y = jnp.dot(w2, h, preferred_element_type=jnp.float32) + b2    # (out, CHUNK)
        o_ref[c] = y.astype(o_ref.dtype)
        return carry

    lax.fori_loop(0, chunks_per_tile, body, 0, unroll=min(4, chunks_per_tile))


@functools.partial(jax.jit, static_argnames=("tile_b",))
def linear_net_forward(x, w1, b1, w2, b2, *, tile_b=65536):
    """Forward pass matching PyTorch Linear_Net.

    x:  (B, in)          -- PyTorch (N, in_features) layout
    w1: (hidden, in)     -- PyTorch nn.Linear.weight layout
    b1: (hidden,)
    w2: (out, hidden)
    b2: (out,)
    returns (B, out)
    """
    B, in_features = x.shape
    hidden = w1.shape[0]
    out_features = w2.shape[0]

    # ---- Batch tiling ------------------------------------------------------
    # tile_b is a cap; split the batch EVENLY across grid steps (rounded to the
    # inner chunk, i.e. a multiple of 128) to avoid up to a full tile of
    # zero-padded tail traffic.
    tile_b_max = max(_CHUNK, _round_up(tile_b, _CHUNK))
    n_steps = pl.cdiv(B, tile_b_max)
    tile_b_eff = _round_up(pl.cdiv(B, n_steps), _CHUNK)
    b_pad = n_steps * tile_b_eff
    chunks_per_tile = tile_b_eff // _CHUNK
    n_chunks = n_steps * chunks_per_tile

    # ---- Layout plumbing: batch -> lane axis -------------------------------
    # (pad + reshape + transpose); allow_input_fusion lets XLA fuse this
    # producer into the pallas_call operand so x is not re-materialized in HBM.
    x_p = x if b_pad == B else jnp.pad(x, ((0, b_pad - B), (0, 0)))
    x3 = x_p.reshape(n_chunks, _CHUNK, in_features).transpose(0, 2, 1)  # (n_chunks, in, CHUNK)
    b1c = b1.reshape(hidden, 1)
    b2c = b2.reshape(out_features, 1)

    itemsize = jnp.dtype(x.dtype).itemsize
    cost = pl.CostEstimate(
        flops=2 * b_pad * (in_features * hidden + hidden * out_features),
        transcendentals=0,
        bytes_accessed=(
            b_pad * (in_features + out_features) * itemsize
            + (w1.size + b1.size + w2.size + b2.size) * jnp.dtype(w1.dtype).itemsize
        ),
    )

    y3 = pl.pallas_call(
        _mlp_kernel,
        out_shape=jax.ShapeDtypeStruct((n_chunks, out_features, _CHUNK), x.dtype),
        grid=(n_steps,),
        in_specs=[
            # Streamed, batch-tiled input (lane-dense, double-buffered).
            pl.BlockSpec((chunks_per_tile, in_features, _CHUNK), lambda i: (i, 0, 0)),
            # Weights / biases: full blocks, constant index -> VMEM-resident.
            pl.BlockSpec((hidden, in_features), lambda i: (0, 0)),
            pl.BlockSpec((hidden, 1), lambda i: (0, 0)),
            pl.BlockSpec((out_features, hidden), lambda i: (0, 0)),
            pl.BlockSpec((out_features, 1), lambda i: (0, 0)),
        ],
        out_specs=pl.BlockSpec(
            (chunks_per_tile, out_features, _CHUNK), lambda i: (i, 0, 0)
        ),
        compiler_params=pltpu.CompilerParams(
            # Batch axis is embarrassingly parallel -> shard across TensorCores.
            # (On v7x, CORE_PARALLEL could be tried if plain "parallel" does not
            # split the grid across the 2 TCs.)
            dimension_semantics=("parallel",),
            # Large tiles need more than the default scoped VMEM limit
            # (16 MiB v5e / 32 MiB v6e,v7x); 48 MiB leaves headroom on v7x's
            # 64 MiB per-TC physical VMEM.
            vmem_limit_bytes=48 * 1024 * 1024,
            # Allow the pad/transpose producer of x3 to fuse into the operand.
            allow_input_fusion=[True, False, False, False, False],
        ),
        cost_estimate=cost,
    )(x3, w1, b1c, w2, b2c)

    # Back to the PyTorch (N, out_features) convention; drop padded rows.
    return y3.transpose(0, 2, 1).reshape(b_pad, out_features)[:B]


def init_params(key, input_size=11, hidden_size=32, output_size=3):
    # Deterministic init mimicking nn.Linear: U(-1/sqrt(fan_in), 1/sqrt(fan_in)),
    # weights stored in the PyTorch (out_features, in_features) layout.
    k1, k2, k3, k4 = jax.random.split(key, 4)
    bound1 = 1.0 / jnp.sqrt(jnp.float32(input_size))
    bound2 = 1.0 / jnp.sqrt(jnp.float32(hidden_size))
    w1 = jax.random.uniform(k1, (hidden_size, input_size), jnp.float32, -bound1, bound1)
    b1 = jax.random.uniform(k2, (hidden_size,), jnp.float32, -bound1, bound1)
    w2 = jax.random.uniform(k3, (output_size, hidden_size), jnp.float32, -bound2, bound2)
    b2 = jax.random.uniform(k4, (output_size,), jnp.float32, -bound2, bound2)
    return w1, b1, w2, b2


def _reference(x, w1, b1, w2, b2):
    return jnp.maximum(x @ w1.T + b1, 0.0) @ w2.T + b2


if __name__ == "__main__":
    key = jax.random.PRNGKey(0)
    k_params, k_x = jax.random.split(key)

    batch, input_size, hidden_size, output_size = 8, 11, 32, 3
    w1, b1, w2, b2 = init_params(k_params, input_size, hidden_size, output_size)
    x = jax.random.normal(k_x, (batch, input_size), jnp.float32)

    out = jax.block_until_ready(linear_net_forward(x, w1, b1, w2, b2))
    ref = _reference(x, w1, b1, w2, b2)
    assert out.shape == (batch, output_size)
    assert jnp.allclose(out, ref, atol=1e-5, rtol=1e-5)

    # Padding / even-split path (B not a multiple of the chunk).
    x1 = jax.random.normal(k_x, (1000, input_size), jnp.float32)
    out1 = jax.block_until_ready(linear_net_forward(x1, w1, b1, w2, b2))
    assert jnp.allclose(out1, _reference(x1, w1, b1, w2, b2), atol=1e-5, rtol=1e-5)

    # Multi-grid-step path (small tile cap -> 4 grid steps).
    x2 = jax.random.normal(k_x, (2048, input_size), jnp.float32)
    out2 = jax.block_until_ready(linear_net_forward(x2, w1, b1, w2, b2, tile_b=512))
    assert jnp.allclose(out2, _reference(x2, w1, b1, w2, b2), atol=1e-5, rtol=1e-5)

    print("KERNEL_OK")
</pallas_src>

<mosaic_0001>
module attributes {stable_mosaic.version = 11 : i64} {
  func.func @_mlp_kernel(%arg0: i32, %arg1: memref<1x11x512xf32, #tpu.memory_space<vmem>>, %arg2: memref<32x11xf32, #tpu.memory_space<vmem>>, %arg3: memref<32x1xf32, #tpu.memory_space<vmem>>, %arg4: memref<3x32xf32, #tpu.memory_space<vmem>>, %arg5: memref<3x1xf32, #tpu.memory_space<vmem>>, %arg6: memref<1x3x512xf32, #tpu.memory_space<vmem>>) attributes {dimension_semantics = [#tpu.dimension_semantics<parallel>], iteration_bounds = array<i64: 1>, scalar_prefetch = 0 : i64, scratch_operands = 0 : i64, tpu.core_type = #tpu.core_type<tc>, window_params = [{transform_indices = @transform_0, window_bounds = array<i64: 1, 11, 512>}, {pipeline_mode = #tpu.pipeline_mode<synchronous>, transform_indices = @transform_1, window_bounds = array<i64: 32, 11>}, {pipeline_mode = #tpu.pipeline_mode<synchronous>, transform_indices = @transform_2, window_bounds = array<i64: 32, 1>}, {pipeline_mode = #tpu.pipeline_mode<synchronous>, transform_indices = @transform_3, window_bounds = array<i64: 3, 32>}, {pipeline_mode = #tpu.pipeline_mode<synchronous>, transform_indices = @transform_4, window_bounds = array<i64: 3, 1>}, {transform_indices = @transform_5, window_bounds = array<i64: 1, 3, 512>}]} {
    %c0 = arith.constant 0 : index
    %c0_0 = arith.constant 0 : index
    %0 = vector.load %arg2[%c0, %c0_0] : memref<32x11xf32, #tpu.memory_space<vmem>>, vector<32x11xf32>
    %c0_1 = arith.constant 0 : index
    %c0_2 = arith.constant 0 : index
    %1 = vector.load %arg4[%c0_1, %c0_2] : memref<3x32xf32, #tpu.memory_space<vmem>>, vector<3x32xf32>
    %c0_3 = arith.constant 0 : index
    %c0_4 = arith.constant 0 : index
    %2 = vector.load %arg3[%c0_3, %c0_4] : memref<32x1xf32, #tpu.memory_space<vmem>>, vector<32x1xf32>
    %3 = vector.shape_cast %2 : vector<32x1xf32> to vector<32x1xf32>
    %4 = vector.broadcast %3 : vector<32x1xf32> to vector<32x512xf32>
    %c0_5 = arith.constant 0 : index
    %c0_6 = arith.constant 0 : index
    %5 = vector.load %arg5[%c0_5, %c0_6] : memref<3x1xf32, #tpu.memory_space<vmem>>, vector<3x1xf32>
    %6 = vector.shape_cast %5 : vector<3x1xf32> to vector<3x1xf32>
    %7 = vector.broadcast %6 : vector<3x1xf32> to vector<3x512xf32>
    %c0_i32 = arith.constant 0 : i32
    %8 = arith.index_cast %c0_i32 : i32 to index
    %c0_7 = arith.constant 0 : index
    %c0_8 = arith.constant 0 : index
    %9 = vector.load %arg1[%8, %c0_7, %c0_8] : memref<1x11x512xf32, #tpu.memory_space<vmem>>, vector<1x11x512xf32>
    %10 = vector.shape_cast %9 : vector<1x11x512xf32> to vector<11x512xf32>
    %cst = arith.constant dense<0.000000e+00> : vector<32x512xf32>
    %11 = tpu.matmul %0, %10, %cst {dimension_numbers = #tpu.dot_dimension_numbers<[1], [0], [0], [1], [0, 0, 1, 1], [], []>} : vector<32x11xf32>, vector<11x512xf32>, vector<32x512xf32> -> vector<32x512xf32>
    %12 = arith.addf %11, %4 : vector<32x512xf32>
    %cst_9 = arith.constant 0.000000e+00 : f32
    %13 = vector.broadcast %cst_9 : f32 to vector<32x512xf32>
    %14 = arith.maximumf %12, %13 : vector<32x512xf32>
    %cst_10 = arith.constant dense<0.000000e+00> : vector<3x512xf32>
    %15 = tpu.matmul %1, %14, %cst_10 {dimension_numbers = #tpu.dot_dimension_numbers<[1], [0], [0], [1], [0, 0, 1, 1], [], []>} : vector<3x32xf32>, vector<32x512xf32>, vector<3x512xf32> -> vector<3x512xf32>
    %16 = arith.addf %15, %7 : vector<3x512xf32>
    %17 = arith.index_cast %c0_i32 : i32 to index
    %c0_11 = arith.constant 0 : index
    %c0_12 = arith.constant 0 : index
    %18 = vector.load %arg6[%17, %c0_11, %c0_12] : memref<1x3x512xf32, #tpu.memory_space<vmem>>, vector<1x3x512xf32>
    %19 = vector.shape_cast %18 : vector<1x3x512xf32> to vector<3x512xf32>
    %20 = vector.shape_cast %16 : vector<3x512xf32> to vector<1x3x512xf32>
    tpu.vector_store %arg6[%17, %c0_11, %c0_12], %20 {strides = array<i32>} : memref<1x3x512xf32, #tpu.memory_space<vmem>>, vector<1x3x512xf32>,
    %c1_i32 = arith.constant 1 : i32
    return
  }
  func.func @transform_0(%arg0: i32) -> (i32, i32, i32) {
    %c0_i32 = arith.constant 0 : i32
    %c0_i32_0 = arith.constant 0 : i32
    %c0_i32_1 = arith.constant 0 : i32
    return %arg0, %c0_i32, %c0_i32_0 : i32, i32, i32
  }
  func.func @transform_1(%arg0: i32) -> (i32, i32) {
    %c0_i32 = arith.constant 0 : i32
    %c0_i32_0 = arith.constant 0 : i32
    %c0_i32_1 = arith.constant 0 : i32
    return %c0_i32, %c0_i32_0 : i32, i32
  }
  func.func @transform_2(%arg0: i32) -> (i32, i32) {
    %c0_i32 = arith.constant 0 : i32
    %c0_i32_0 = arith.constant 0 : i32
    %c0_i32_1 = arith.constant 0 : i32
    return %c0_i32, %c0_i32_0 : i32, i32
  }
  func.func @transform_3(%arg0: i32) -> (i32, i32) {
    %c0_i32 = arith.constant 0 : i32
    %c0_i32_0 = arith.constant 0 : i32
    %c0_i32_1 = arith.constant 0 : i32
    return %c0_i32, %c0_i32_0 : i32, i32
  }
  func.func @transform_4(%arg0: i32) -> (i32, i32) {
    %c0_i32 = arith.constant 0 : i32
    %c0_i32_0 = arith.constant 0 : i32
    %c0_i32_1 = arith.constant 0 : i32
    return %c0_i32, %c0_i32_0 : i32, i32
  }
  func.func @transform_5(%arg0: i32) -> (i32, i32, i32) {
    %c0_i32 = arith.constant 0 : i32
    %c0_i32_0 = arith.constant 0 : i32
    %c0_i32_1 = arith.constant 0 : i32
    return %arg0, %c0_i32, %c0_i32_0 : i32, i32, i32
  }
}

</mosaic_0001>

<llo_original>
// kernel: linear_net_forward.2
$region0: #{linear_net_forward.2}
  #allocation0 [shape = 'u32[]', space=smem, size = 0x4, offset = 0x4, fixed_abs, tag = 'smem constant byte address 0x4 - core index']
  #allocation1 [shape = 'u32[144,128]{1,0:T(1,128)}', space=vmem, size = 0x12000, scoped, tag = 'internal scratch']
  #allocation2 [shape = 'u32[2048]{0}', space=vmem, size = 0x2000, scoped, tag = 'scoped memory for linear_net_forward.2']
  #allocation3 [shape = 'u32[2048]{0}', space=vmem, size = 0x2000, scoped, tag = 'scoped memory for linear_net_forward.2']
  #allocation4 [shape = 'u32[2048]{0}', space=vmem, size = 0x2000, scoped, tag = 'scoped memory for linear_net_forward.2']
  #allocation5 [shape = 'u32[2048]{0}', space=vmem, size = 0x2000, scoped, tag = 'scoped memory for linear_net_forward.2']
  #allocation6 [shape = 'u32[2048]{0}', space=vmem, size = 0x2000, scoped, tag = 'scoped memory for linear_net_forward.2']
  %s0 = inlined_call_operand.vmem [shape: f32[32,11], index: 0, kind: input, shape index: {}]
  %s1 = inlined_call_operand.vmem [shape: f32[32,1], index: 1, kind: input, shape index: {}]
  %s2 = inlined_call_operand.vmem [shape: f32[3,32], index: 2, kind: input, shape index: {}]
  %s3 = inlined_call_operand.vmem [shape: f32[3,1], index: 3, kind: input, shape index: {}]
  %s4 = inlined_call_operand.vmem [shape: f32[8,11], index: 4, kind: input, shape index: {}]
  %s5 = inlined_call_operand.<no memory space> [shape: f32[], index: 5, kind: input, shape index: {}]
  %s6 = inlined_call_operand.vmem [shape: f32[1,3,512], index: 6, kind: output, shape index: {}]
  %s7 = sld [smem:[#allocation0]]
  $region30: #{linear_net_forward.2} parent=0
    _
  %s9 = ssub.s32 1, %s7
  %s10 = scalar_select 0, %s9, %s7
  %v11 = vstv %s5
  $region1: #{linear_net_forward.2} parent=0
    #allocation7 [shape = 'u8[32768]{0}', space=vmem, size = 0x8000, dematerialized = true, scoped, tag = 'FusionAdapter Buffer %fusion.1 = f32[1,11,512]{2,1,0:T(8,128)} fusion(%param_4.2, %param_5), kind=kLoop, calls=%fused_computation.1.clone, metadata={op_name="jit(linear_net_forward)/transpose" stack_frame_id=8}']
    // Predicated region
    $region2: #{linear_net_forward.2} parent=1 // pred_check
      _
    $region3: #{linear_net_forward.2} parent=1 // pred_check_branch
      %13 = sbr.rel (0) target = $region5
    $region4: #{linear_net_forward.2} parent=1 // pred_region
      _
    $region5: #{linear_net_forward.2} parent=1 // pred_fallthru
      _
    // Predicated region
    $region6: #{linear_net_forward.2} parent=1 // pred_check
      _
    $region7: #{linear_net_forward.2} parent=1 // pred_check_branch
      %15 = sbr.rel (0) target = $region9
    $region8: #{linear_net_forward.2} parent=1 // pred_region
      _
    $region9: #{linear_net_forward.2} parent=1 // pred_fallthru
      _
    // Predicated region
    $region10: #{linear_net_forward.2} parent=1 // pred_check
      _
    $region11: #{linear_net_forward.2} parent=1 // pred_check_branch
      %17 = sbr.rel (0) target = $region13
    $region12: #{linear_net_forward.2} parent=1 // pred_region
      _
    $region13: #{linear_net_forward.2} parent=1 // pred_fallthru
      _
    // Predicated region
    $region14: #{linear_net_forward.2} parent=1 // pred_check
      _
    $region15: #{linear_net_forward.2} parent=1 // pred_check_branch
      %19 = sbr.rel (0) target = $region17
    $region16: #{linear_net_forward.2} parent=1 // pred_region
      _
    $region17: #{linear_net_forward.2} parent=1 // pred_fallthru
      _
    // Predicated region
    $region18: #{linear_net_forward.2} parent=1 // pred_check
      _
    $region19: #{linear_net_forward.2} parent=1 // pred_check_branch
      %21 = sbr.rel (0) target = $region21
    $region20: #{linear_net_forward.2} parent=1 // pred_region
      _
    $region21: #{linear_net_forward.2} parent=1 // pred_fallthru
      _
    %v22 = vld [vmem:[%s4] sm:$0xff]
    %v23 = vlaneseq
    %v24 = vshrl.u32 %v23, 7
    %vm26 = vcmp.lt.s32.totalorder %v24, 11
    %v27 = vsel %vm26, %v22, %v11
    %v28 = vlaneseq
    %v29 = vand.u32 %v28, 127
    %vm31 = vcmp.lt.s32.totalorder %v29, 8
    %v32 = vsel %vm31, %v27, %v11
    %34 = vst [vmem:[#allocation7] sm:$0xff] %v32
    %s35 = scalar_lea.vmem [#allocation7], 8
    %37 = vst [vmem:[%s35] sm:$0xff] %v11
    %s38 = scalar_lea.vmem [#allocation7], 16
    %40 = vst [vmem:[%s38] sm:$0xff] %v11
    %s41 = scalar_lea.vmem [#allocation7], 24
    %43 = vst [vmem:[%s41] sm:$0xff] %v11
    %s44 = scalar_lea.vmem %s4, 8
    %v45 = vld [vmem:[%s44] sm:$0xff]
    %v46 = vlaneseq
    %v47 = vshrl.u32 %v46, 7
    %v48 = vadd.s32 %v47, 8
    %vm49 = vcmp.lt.s32.totalorder %v48, 11
    %v50 = vsel %vm49, %v45, %v11
    %v51 = vlaneseq
    %v52 = vand.u32 %v51, 127
    %vm54 = vcmp.lt.s32.totalorder %v52, 8
    %v55 = vsel %vm54, %v50, %v11
    %s56 = scalar_lea.vmem [#allocation7], 32
    %58 = vst [vmem:[%s56] sm:$0xff] %v55
    %s59 = scalar_lea.vmem [#allocation7], 40
    %61 = vst [vmem:[%s59] sm:$0xff] %v11
    %s62 = scalar_lea.vmem [#allocation7], 48
    %64 = vst [vmem:[%s62] sm:$0xff] %v11
    %s65 = scalar_lea.vmem [#allocation7], 56
    %67 = vst [vmem:[%s65] sm:$0xff] %v11
    %v68 = vld [vmem:[%s0] sm:$0xff]
    %v69 = vld [vmem:[%s0 + $0x8] sm:$0xff]
    %v70 = vld [vmem:[%s0 + $0x10] sm:$0xff]
    %v71 = vld [vmem:[%s0 + $0x18] sm:$0xff]
    %v72 = vld [vmem:[%s2] sm:$0x7]
    %v73 = vld [vmem:[%s1] sm:$0xff]
    %v74 = vld [vmem:[%s1 + $0x8] sm:$0xff]
    %v75 = vld [vmem:[%s1 + $0x10] sm:$0xff]
    %v76 = vld [vmem:[%s1 + $0x18] sm:$0xff]
    %78 = vset.pattern.permute.xlu0 0
    %79 = vperm.xlu0 %78, %v73
    %v80 = vpop.permute.xlu0 %79
    %83 = vset.pattern.permute.xlu0 0
    %84 = vperm.xlu0 %83, %v74
    %v85 = vpop.permute.xlu0 %84
    %88 = vset.pattern.permute.xlu0 0
    %89 = vperm.xlu0 %88, %v75
    %v90 = vpop.permute.xlu0 %89
    %93 = vset.pattern.permute.xlu0 0
    %94 = vperm.xlu0 %93, %v76
    %v95 = vpop.permute.xlu0 %94
    %v97 = vld [vmem:[%s3] sm:$0x7]
    %99 = vset.pattern.permute.xlu0 0
    %100 = vperm.xlu0 %99, %v97
    %v101 = vpop.permute.xlu0 %100
    %v103 = vld [vmem:[#allocation7] sm:$0xff]
    %v104 = vld [vmem:[#allocation7 + $0x8] sm:$0xff]
    %v105 = vld [vmem:[#allocation7 + $0x10] sm:$0xff]
    %v106 = vld [vmem:[#allocation7 + $0x18] sm:$0xff]
    %v107 = vld [vmem:[#allocation7 + $0x20] sm:$0x7]
    %v108 = vld [vmem:[#allocation7 + $0x28] sm:$0x7]
    %v109 = vld [vmem:[#allocation7 + $0x30] sm:$0x7]
    %v110 = vld [vmem:[#allocation7 + $0x38] sm:$0x7]
    %vm111 = vcmask 89088
    %v113 = vsel %vm111, %v68, 0
    %v116 = vsel %vm111, %v69, 0
    %v119 = vsel %vm111, %v70, 0
    %v122 = vsel %vm111, %v71, 0
    %vm124 = vcmask 1042432
    %v126 = vsel %vm124, %v107, 0
    %v129 = vsel %vm124, %v108, 0
    %v132 = vsel %vm124, %v109, 0
    %v135 = vsel %vm124, %v110, 0
    %137 = vmatprep.subr.mxu0 %v104
    %138 = vmatpush1.msra.mxu0 %v103
    %139 = vmatprep.subr.mxu0 %v129
    %140 = vmatpush1.msra.mxu0 %v126
    %141 = vmatprep.subr.mxu0 0.0
    %142 = vmatpush1.msra.mxu0 0.0
    %143 = vmatprep.subr.mxu0 0.0
    %144 = vmatpush1.msra.mxu0 0.0
    %145 = vmatprep.subr.mxu0 0.0
    %146 = vmatpush1.msra.mxu0 0.0
    %147 = vmatprep.subr.mxu0 0.0
    %148 = vmatpush1.msra.mxu0 0.0
    %149 = vmatprep.subr.mxu0 0.0
    %150 = vmatpush1.msra.mxu0 0.0
    %151 = vmatprep.subr.mxu0 0.0
    %152 = vmatpush1.msra.mxu0 0.0
    %153 = vmatprep.subr.mxu0 0.0
    %154 = vmatpush1.msra.mxu0 0.0
    %155 = vmatprep.subr.mxu0 0.0
    %156 = vmatpush1.msra.mxu0 0.0
    %157 = vmatprep.subr.mxu0 0.0
    %158 = vmatpush1.msra.mxu0 0.0
    %159 = vmatprep.subr.mxu0 0.0
    %160 = vmatpush1.msra.mxu0 0.0
    %161 = vmatprep.subr.mxu0 0.0
    %162 = vmatpush1.msra.mxu0 0.0
    %163 = vmatprep.subr.mxu0 0.0
    %164 = vmatpush1.msra.mxu0 0.0
    %165 = vmatprep.subr.mxu0 0.0
    %166 = vmatpush1.msra.mxu0 0.0
    %167 = vmatprep.subr.mxu0 0.0
    %168 = vmatpush1.msra.mxu0 0.0
    %169 = vmatprep.subr.mxu0 0.0
    %170 = vmatpush1.msra.mxu0 0.0
    %171 = vmatprep.subr.mxu0 0.0
    %172 = vmatpush1.msra.mxu0 0.0
    %173 = vmatprep.subr.mxu0 0.0
    %174 = vmatpush1.msra.mxu0 0.0
    %175 = vmatprep.subr.mxu0 0.0
    %176 = vmatpush1.msra.mxu0 0.0
    %177 = vmatprep.subr.mxu0 0.0
    %178 = vmatpush1.msra.mxu0 0.0
    %179 = vmatprep.subr.mxu0 0.0
    %180 = vmatpush1.msra.mxu0 0.0
    %181 = vmatprep.subr.mxu0 0.0
    %182 = vmatpush1.msra.mxu0 0.0
    %183 = vmatprep.subr.mxu0 0.0
    %184 = vmatpush1.msra.mxu0 0.0
    %185 = vmatprep.subr.mxu0 0.0
    %186 = vmatpush1.msra.mxu0 0.0
    %187 = vmatprep.subr.mxu0 0.0
    %188 = vmatpush1.msra.mxu0 0.0
    %189 = vmatprep.subr.mxu0 0.0
    %190 = vmatpush1.msra.mxu0 0.0
    %191 = vmatprep.subr.mxu0 0.0
    %192 = vmatpush1.msra.mxu0 0.0
    %193 = vmatprep.subr.mxu0 0.0
    %194 = vmatpush1.msra.mxu0 0.0
    %195 = vmatprep.subr.mxu0 0.0
    %196 = vmatpush1.msra.mxu0 0.0
    %197 = vmatprep.subr.mxu0 0.0
    %198 = vmatpush1.msra.mxu0 0.0
    %199 = vmatprep.subr.mxu0 0.0
    %200 = vmatpush1.msra.mxu0 0.0
    %201 = vmatprep.mubr.f32.mxu0 0.0
    %202 = vmatmul.mubr.f32.gmra.mrb[0].mxu0 %v113
    %v203 = vpop.f32.mrb[0].mxu0
    %v204 = vadd.f32 %v80, %v203
    %v205 = vpop.f32.mrb[0].mxu0
    %v206 = vadd.f32 %v80, %v205
    %207 = vmatprep.mubr.f32.mxu0 0.0
    %208 = vmatmul.mubr.f32.gmra.mrb[0].mxu0 %v116
    %v209 = vpop.f32.mrb[0].mxu0
    %v210 = vadd.f32 %v85, %v209
    %v211 = vpop.f32.mrb[0].mxu0
    %v212 = vadd.f32 %v85, %v211
    %213 = vmatprep.mubr.f32.mxu0 0.0
    %214 = vmatmul.mubr.f32.gmra.mrb[0].mxu0 %v119
    %v215 = vpop.f32.mrb[0].mxu0
    %v216 = vadd.f32 %v90, %v215
    %v217 = vpop.f32.mrb[0].mxu0
    %v218 = vadd.f32 %v90, %v217
    %219 = vmatprep.mubr.f32.mxu0 0.0
    %220 = vmatmul.mubr.f32.gmra.mrb[0].mxu0 %v122
    %v221 = vpop.f32.mrb[0].mxu0
    %v222 = vadd.f32 %v95, %v221
    %v223 = vpop.f32.mrb[0].mxu0
    %v224 = vadd.f32 %v95, %v223
    %225 = vdwg.mxu0
    %226 = vmatprep.subr.mxu0 %v106
    %227 = vmatpush1.msra.mxu0 %v105
    %228 = vmatprep.subr.mxu0 %v135
    %229 = vmatpush1.msra.mxu0 %v132
    %230 = vmatprep.subr.mxu0 0.0
    %231 = vmatpush1.msra.mxu0 0.0
    %232 = vmatprep.subr.mxu0 0.0
    %233 = vmatpush1.msra.mxu0 0.0
    %234 = vmatprep.subr.mxu0 0.0
    %235 = vmatpush1.msra.mxu0 0.0
    %236 = vmatprep.subr.mxu0 0.0
    %237 = vmatpush1.msra.mxu0 0.0
    %238 = vmatprep.subr.mxu0 0.0
    %239 = vmatpush1.msra.mxu0 0.0
    %240 = vmatprep.subr.mxu0 0.0
    %241 = vmatpush1.msra.mxu0 0.0
    %242 = vmatprep.subr.mxu0 0.0
    %243 = vmatpush1.msra.mxu0 0.0
    %244 = vmatprep.subr.mxu0 0.0
    %245 = vmatpush1.msra.mxu0 0.0
    %246 = vmatprep.subr.mxu0 0.0
    %247 = vmatpush1.msra.mxu0 0.0
    %248 = vmatprep.subr.mxu0 0.0
    %249 = vmatpush1.msra.mxu0 0.0
    %250 = vmatprep.subr.mxu0 0.0
    %251 = vmatpush1.msra.mxu0 0.0
    %252 = vmatprep.subr.mxu0 0.0
    %253 = vmatpush1.msra.mxu0 0.0
    %254 = vmatprep.subr.mxu0 0.0
    %255 = vmatpush1.msra.mxu0 0.0
    %256 = vmatprep.subr.mxu0 0.0
    %257 = vmatpush1.msra.mxu0 0.0
    %258 = vmatprep.subr.mxu0 0.0
    %259 = vmatpush1.msra.mxu0 0.0
    %260 = vmatprep.subr.mxu0 0.0
    %261 = vmatpush1.msra.mxu0 0.0
    %262 = vmatprep.subr.mxu0 0.0
    %263 = vmatpush1.msra.mxu0 0.0
    %264 = vmatprep.subr.mxu0 0.0
    %265 = vmatpush1.msra.mxu0 0.0
    %266 = vmatprep.subr.mxu0 0.0
    %267 = vmatpush1.msra.mxu0 0.0
    %268 = vmatprep.subr.mxu0 0.0
    %269 = vmatpush1.msra.mxu0 0.0
    %270 = vmatprep.subr.mxu0 0.0
    %271 = vmatpush1.msra.mxu0 0.0
    %272 = vmatprep.subr.mxu0 0.0
    %273 = vmatpush1.msra.mxu0 0.0
    %274 = vmatprep.subr.mxu0 0.0
    %275 = vmatpush1.msra.mxu0 0.0
    %276 = vmatprep.subr.mxu0 0.0
    %277 = vmatpush1.msra.mxu0 0.0
    %278 = vmatprep.subr.mxu0 0.0
    %279 = vmatpush1.msra.mxu0 0.0
    %280 = vmatprep.subr.mxu0 0.0
    %281 = vmatpush1.msra.mxu0 0.0
    %282 = vmatprep.subr.mxu0 0.0
    %283 = vmatpush1.msra.mxu0 0.0
    %284 = vmatprep.subr.mxu0 0.0
    %285 = vmatpush1.msra.mxu0 0.0
    %286 = vmatprep.subr.mxu0 0.0
    %287 = vmatpush1.msra.mxu0 0.0
    %288 = vmatprep.subr.mxu0 0.0
    %289 = vmatpush1.msra.mxu0 0.0
    %290 = vmatprep.mubr.f32.mxu0 0.0
    %291 = vmatmul.mubr.f32.gmra.mrb[0].mxu0 %v113
    %v292 = vpop.f32.mrb[0].mxu0
    %v293 = vadd.f32 %v80, %v292
    %v294 = vpop.f32.mrb[0].mxu0
    %v295 = vadd.f32 %v80, %v294
    %296 = vmatprep.mubr.f32.mxu0 0.0
    %297 = vmatmul.mubr.f32.gmra.mrb[0].mxu0 %v116
    %v298 = vpop.f32.mrb[0].mxu0
    %v299 = vadd.f32 %v85, %v298
    %v300 = vpop.f32.mrb[0].mxu0
    %v301 = vadd.f32 %v85, %v300
    %302 = vmatprep.mubr.f32.mxu0 0.0
    %303 = vmatmul.mubr.f32.gmra.mrb[0].mxu0 %v119
    %v304 = vpop.f32.mrb[0].mxu0
    %v305 = vadd.f32 %v90, %v304
    %v306 = vpop.f32.mrb[0].mxu0
    %v307 = vadd.f32 %v90, %v306
    %308 = vmatprep.mubr.f32.mxu0 0.0
    %309 = vmatmul.mubr.f32.gmra.mrb[0].mxu0 %v122
    %v310 = vpop.f32.mrb[0].mxu0
    %v311 = vadd.f32 %v95, %v310
    %v312 = vpop.f32.mrb[0].mxu0
    %v313 = vadd.f32 %v95, %v312
    %314 = vdwg.mxu0
    %v315 = vmax.f32 %v204, 0.0
    %v316 = vmax.f32 %v206, 0.0
    %v317 = vmax.f32 %v293, 0.0
    %v318 = vmax.f32 %v295, 0.0
    %v319 = vmax.f32 %v210, 0.0
    %v320 = vmax.f32 %v212, 0.0
    %v321 = vmax.f32 %v299, 0.0
    %v322 = vmax.f32 %v301, 0.0
    %v323 = vmax.f32 %v216, 0.0
    %v324 = vmax.f32 %v218, 0.0
    %v325 = vmax.f32 %v305, 0.0
    %v326 = vmax.f32 %v307, 0.0
    %v327 = vmax.f32 %v222, 0.0
    %v328 = vmax.f32 %v224, 0.0
    %v329 = vmax.f32 %v311, 0.0
    %v330 = vmax.f32 %v313, 0.0
    %vm331 = vcmask 261120
    %v333 = vsel %vm331, %v72, 0
    %335 = vmatprep.subr.mxu0 %v316
    %336 = vmatpush1.msra.mxu0 %v315
    %337 = vmatprep.subr.mxu0 %v320
    %338 = vmatpush1.msra.mxu0 %v319
    %339 = vmatprep.subr.mxu0 %v324
    %340 = vmatpush1.msra.mxu0 %v323
    %341 = vmatprep.subr.mxu0 %v328
    %342 = vmatpush1.msra.mxu0 %v327
    %343 = vmatprep.subr.mxu0 0.0
    %344 = vmatpush1.msra.mxu0 0.0
    %345 = vmatprep.subr.mxu0 0.0
    %346 = vmatpush1.msra.mxu0 0.0
    %347 = vmatprep.subr.mxu0 0.0
    %348 = vmatpush1.msra.mxu0 0.0
    %349 = vmatprep.subr.mxu0 0.0
    %350 = vmatpush1.msra.mxu0 0.0
    %351 = vmatprep.subr.mxu0 0.0
    %352 = vmatpush1.msra.mxu0 0.0
    %353 = vmatprep.subr.mxu0 0.0
    %354 = vmatpush1.msra.mxu0 0.0
    %355 = vmatprep.subr.mxu0 0.0
    %356 = vmatpush1.msra.mxu0 0.0
    %357 = vmatprep.subr.mxu0 0.0
    %358 = vmatpush1.msra.mxu0 0.0
    %359 = vmatprep.subr.mxu0 0.0
    %360 = vmatpush1.msra.mxu0 0.0
    %361 = vmatprep.subr.mxu0 0.0
    %362 = vmatpush1.msra.mxu0 0.0
    %363 = vmatprep.subr.mxu0 0.0
    %364 = vmatpush1.msra.mxu0 0.0
    %365 = vmatprep.subr.mxu0 0.0
    %366 = vmatpush1.msra.mxu0 0.0
    %367 = vmatprep.subr.mxu0 0.0
    %368 = vmatpush1.msra.mxu0 0.0
    %369 = vmatprep.subr.mxu0 0.0
    %370 = vmatpush1.msra.mxu0 0.0
    %371 = vmatprep.subr.mxu0 0.0
    %372 = vmatpush1.msra.mxu0 0.0
    %373 = vmatprep.subr.mxu0 0.0
    %374 = vmatpush1.msra.mxu0 0.0
    %375 = vmatprep.subr.mxu0 0.0
    %376 = vmatpush1.msra.mxu0 0.0
    %377 = vmatprep.subr.mxu0 0.0
    %378 = vmatpush1.msra.mxu0 0.0
    %379 = vmatprep.subr.mxu0 0.0
    %380 = vmatpush1.msra.mxu0 0.0
    %381 = vmatprep.subr.mxu0 0.0
    %382 = vmatpush1.msra.mxu0 0.0
    %383 = vmatprep.subr.mxu0 0.0
    %384 = vmatpush1.msra.mxu0 0.0
    %385 = vmatprep.subr.mxu0 0.0
    %386 = vmatpush1.msra.mxu0 0.0
    %387 = vmatprep.subr.mxu0 0.0
    %388 = vmatpush1.msra.mxu0 0.0
    %389 = vmatprep.subr.mxu0 0.0
    %390 = vmatpush1.msra.mxu0 0.0
    %391 = vmatprep.subr.mxu0 0.0
    %392 = vmatpush1.msra.mxu0 0.0
    %393 = vmatprep.subr.mxu0 0.0
    %394 = vmatpush1.msra.mxu0 0.0
    %395 = vmatprep.subr.mxu0 0.0
    %396 = vmatpush1.msra.mxu0 0.0
    %397 = vmatprep.subr.mxu0 0.0
    %398 = vmatpush1.msra.mxu0 0.0
    %399 = vmatprep.mubr.f32.mxu0 0.0
    %400 = vmatmul.mubr.f32.gmra.mrb[0].mxu0 %v333
    %v401 = vpop.f32.mrb[0].mxu0
    %v402 = vadd.f32 %v101, %v401
    %v403 = vpop.f32.mrb[0].mxu0
    %v404 = vadd.f32 %v101, %v403
    %405 = vdwg.mxu0
    %406 = vmatprep.subr.mxu0 %v318
    %407 = vmatpush1.msra.mxu0 %v317
    %408 = vmatprep.subr.mxu0 %v322
    %409 = vmatpush1.msra.mxu0 %v321
    %410 = vmatprep.subr.mxu0 %v326
    %411 = vmatpush1.msra.mxu0 %v325
    %412 = vmatprep.subr.mxu0 %v330
    %413 = vmatpush1.msra.mxu0 %v329
    %414 = vmatprep.subr.mxu0 0.0
    %415 = vmatpush1.msra.mxu0 0.0
    %416 = vmatprep.subr.mxu0 0.0
    %417 = vmatpush1.msra.mxu0 0.0
    %418 = vmatprep.subr.mxu0 0.0
    %419 = vmatpush1.msra.mxu0 0.0
    %420 = vmatprep.subr.mxu0 0.0
    %421 = vmatpush1.msra.mxu0 0.0
    %422 = vmatprep.subr.mxu0 0.0
    %423 = vmatpush1.msra.mxu0 0.0
    %424 = vmatprep.subr.mxu0 0.0
    %425 = vmatpush1.msra.mxu0 0.0
    %426 = vmatprep.subr.mxu0 0.0
    %427 = vmatpush1.msra.mxu0 0.0
    %428 = vmatprep.subr.mxu0 0.0
    %429 = vmatpush1.msra.mxu0 0.0
    %430 = vmatprep.subr.mxu0 0.0
    %431 = vmatpush1.msra.mxu0 0.0
    %432 = vmatprep.subr.mxu0 0.0
    %433 = vmatpush1.msra.mxu0 0.0
    %434 = vmatprep.subr.mxu0 0.0
    %435 = vmatpush1.msra.mxu0 0.0
    %436 = vmatprep.subr.mxu0 0.0
    %437 = vmatpush1.msra.mxu0 0.0
    %438 = vmatprep.subr.mxu0 0.0
    %439 = vmatpush1.msra.mxu0 0.0
    %440 = vmatprep.subr.mxu0 0.0
    %441 = vmatpush1.msra.mxu0 0.0
    %442 = vmatprep.subr.mxu0 0.0
    %443 = vmatpush1.msra.mxu0 0.0
    %444 = vmatprep.subr.mxu0 0.0
    %445 = vmatpush1.msra.mxu0 0.0
    %446 = vmatprep.subr.mxu0 0.0
    %447 = vmatpush1.msra.mxu0 0.0
    %448 = vmatprep.subr.mxu0 0.0
    %449 = vmatpush1.msra.mxu0 0.0
    %450 = vmatprep.subr.mxu0 0.0
    %451 = vmatpush1.msra.mxu0 0.0
    %452 = vmatprep.subr.mxu0 0.0
    %453 = vmatpush1.msra.mxu0 0.0
    %454 = vmatprep.subr.mxu0 0.0
    %455 = vmatpush1.msra.mxu0 0.0
    %456 = vmatprep.subr.mxu0 0.0
    %457 = vmatpush1.msra.mxu0 0.0
    %458 = vmatprep.subr.mxu0 0.0
    %459 = vmatpush1.msra.mxu0 0.0
    %460 = vmatprep.subr.mxu0 0.0
    %461 = vmatpush1.msra.mxu0 0.0
    %462 = vmatprep.subr.mxu0 0.0
    %463 = vmatpush1.msra.mxu0 0.0
    %464 = vmatprep.subr.mxu0 0.0
    %465 = vmatpush1.msra.mxu0 0.0
    %466 = vmatprep.subr.mxu0 0.0
    %467 = vmatpush1.msra.mxu0 0.0
    %468 = vmatprep.subr.mxu0 0.0
    %469 = vmatpush1.msra.mxu0 0.0
    %470 = vmatprep.mubr.f32.mxu0 0.0
    %471 = vmatmul.mubr.f32.gmra.mrb[0].mxu0 %v333
    %v472 = vpop.f32.mrb[0].mxu0
    %v473 = vadd.f32 %v101, %v472
    %v474 = vpop.f32.mrb[0].mxu0
    %v475 = vadd.f32 %v101, %v474
    %476 = vdwg.mxu0
    %v481 = vcombine.low %v402, %v404
    %v482 = vcombine.low %v473, %v475
    %485 = vst [vmem:[%s6] sm:$0x77] %v481
    %486 = vst [vmem:[%s6 + $0x8] sm:$0x77] %v482
    // Predicated region
    $region22: #{linear_net_forward.2} parent=1 // pred_check
      _
    $region23: #{linear_net_forward.2} parent=1 // pred_check_branch
      %488 = sbr.rel (0) target = $region25
    $region24: #{linear_net_forward.2} parent=1 // pred_region
      _
    $region25: #{linear_net_forward.2} parent=1 // pred_fallthru
      _
    // Predicated region
    $region26: #{linear_net_forward.2} parent=1 // pred_check
      _
    $region27: #{linear_net_forward.2} parent=1 // pred_check_branch
      %490 = sbr.rel (0) target = $region29
    $region28: #{linear_net_forward.2} parent=1 // pred_region
      _
    $region29: #{linear_net_forward.2} parent=1 // pred_fallthru
      _

</llo_original>
